<compile_context>
chip_gen: v7x
topology: tpu7x:2x2x1
jax: 0.10.0
libtpu: 0.0.40
codegen_flags: <defaults>
</compile_context>

<pallas_src>
import numpy as np
import jax
import jax.numpy as jnp
from jax.experimental import pallas as pl
from jax.experimental.pallas import tpu as pltpu


# ----------------------- reference parameter builders -----------------------
def dct_mat(size):
    return np.array(
        [[(np.sqrt(1.0 / size) if i == 0 else np.sqrt(2.0 / size))
          * np.cos((j + 0.5) * np.pi * i / size) for j in range(size)]
         for i in range(size)], dtype=np.float32)


def generate_filter(start, end, size):
    return np.array(
        [[0.0 if (i + j > end or i + j <= start) else 1.0 for j in range(size)]
         for i in range(size)], dtype=np.float32)


# ------------------------------ Pallas kernel --------------------------------
_EPS = np.float32(1e-15)
_INV_LN10 = np.float32(1.0 / np.log(10.0))
# torch.angle of a real tensor is exactly 0 or pi, so log10(|angle| + 1e-15)
# only ever takes these two values.
_LOG10_EPS = np.float32(np.log10(np.float32(1e-15)))
_LOG10_PI = np.float32(np.log10(np.float32(np.pi) + np.float32(1e-15)))


def make_lfs_kernel(T, sa_sq, tiles_pp, KP):
    def kernel(p_ref, wband_ref, out_ref):
        # p_ref:     (T, KP)     DCT coefficients of T patches (bf16, lane-padded)
        # wband_ref: (2*KP, KP)  block-diag(wf, wf) band filters (bf16)
        # out_ref:   (8, KP)     per-sublane-group partial pooled sums (f32),
        #                        resident across the tile ("arbitrary") axis
        t = pl.program_id(2)
        start = (pl.program_id(1) * tiles_pp + t) * T

        @pl.when(t == 0)
        def _init():
            out_ref[...] = jnp.zeros_like(out_ref)

        x = p_ref[...].astype(jnp.float32)                     # DCT coefficients
        log_mag = jnp.log(jnp.abs(x) + _EPS) * _INV_LN10       # log10(|dct| + eps)
        log_ph = jnp.where(x < 0.0, _LOG10_PI, _LOG10_EPS)     # two-constant select

        mdt = wband_ref.dtype
        # merged magnitude+phase band matmul: (T,256) @ (256,128), K=256 fills MXU
        lhs = jnp.concatenate([log_mag.astype(mdt), log_ph.astype(mdt)], axis=-1)
        res = jnp.dot(lhs, wband_ref[...], preferred_element_type=jnp.float32)
        res = jnp.maximum(res, 0.0)       # head ReLU (before global average pool)

        def accumulate(r):
            # (T,128) -> (8,128) group partial sums: pure VALU vreg adds, no XLU.
            out_ref[...] += r.reshape(T // 8, 8, KP).sum(axis=0)

        @pl.when(start + T <= sa_sq)      # full tile: unmasked fast path
        def _full_tile():
            accumulate(res)

        @pl.when(start + T > sa_sq)       # boundary / padding tile: mask rows
        def _tail_tile():
            valid = (start + jax.lax.broadcasted_iota(jnp.int32, (T, 1), 0)) < sa_sq
            accumulate(jnp.where(valid, res, 0.0))

    return kernel


# --------------------------------- wrapper -----------------------------------
class FreProcessingPallas:
    LANE = 128  # patch dimension S*S = 100 padded to a full lane width

    def __init__(self, num_classes=2, img_size=32, window_size=10, M=6,
                 seed=1, mxu_dtype=jnp.bfloat16):
        self.num_classes = num_classes
        self.S = window_size
        self.M = M
        self.mxu_dtype = mxu_dtype
        S, KP = window_size, self.LANE
        assert S * S <= KP and 2 * M <= KP

        key = jax.random.PRNGKey(seed)
        ks = jax.random.split(key, M + 2)

        # unfold (k=10, stride=2, pad=4) composed with the 2-D DCT in ONE conv:
        # vec(D P D^T) = vec(P) @ kron(D^T, D^T)  =>  weight[h, w, 0, c] = kron[h*S+w, c]
        D = dct_mat(S)
        kron = np.kron(D.T, D.T).astype(np.float32)            # (S*S, S*S)
        dct_w = np.zeros((S, S, 1, KP), np.float32)
        dct_w[:, :, 0, :S * S] = kron.reshape(S, S, S * S)
        self.dct_w = jnp.asarray(dct_w)

        # Band filters (base + norm_sigma(learnable)) / ft_num, one column per band,
        # laid out block-diagonally so a single K=256 matmul covers magnitude+phase.
        wcols = []
        for i in range(M):
            base = generate_filter(S * 2.0 / M * i, S * 2.0 / M * (i + 1), S)
            ft_num = float(base.sum())                         # Filter(norm=True)
            learn = 0.1 * jax.random.normal(ks[i], (S, S), dtype=jnp.float32)
            filt = (jnp.asarray(base) + (2.0 * jax.nn.sigmoid(learn) - 1.0)) / ft_num
            wcols.append(filt.reshape(-1))
        wf = jnp.stack(wcols, axis=1)                          # (S*S, M)
        wband = jnp.zeros((2 * KP, KP), jnp.float32)
        wband = wband.at[:S * S, :M].set(wf)                   # magnitude half
        wband = wband.at[KP:KP + S * S, M:2 * M].set(wf)       # phase half
        self.w_band = wband.astype(mxu_dtype)

        # TODO(synk): reference fc is nn.Linear(2048, num_classes) fed by the
        # Xception backbone (pretrained .pth unavailable); in_features = 2*M here.
        self.w_fc = 0.02 * jax.random.normal(ks[M], (2 * M, num_classes),
                                             dtype=jnp.float32)
        self.b_fc = 0.02 * jax.random.normal(ks[M + 1], (1, num_classes),
                                             dtype=jnp.float32)

    def forward(self, x, max_tile_rows=4096):
        # x: (N, 3, H, W) float32 (NCHW like PyTorch), values roughly in [-1, 1]
        N, _, H, W = x.shape
        S, M, KP, C = self.S, self.M, self.LANE, self.num_classes
        assert H == W

        # ---- LFS_Head glue: grayscale + rescale ----
        xg = 0.299 * x[:, 0] + 0.587 * x[:, 1] + 0.114 * x[:, 2]
        xg = (xg + 1.0) * 122.5                                 # (N, H, W)

        sa = (W - S + 8) // 2 + 1
        # NOTE: reference asserts sa == 149 (299x299 input); relaxed for small shapes.
        sa_sq = sa * sa

        # ---- fused unfold + 2-D DCT: each output channel c is DCT coefficient c
        #      of the 10x10 patch (channels S*S..127 are zero -> lane padding).
        dct = jax.lax.conv_general_dilated(
            xg[..., None], self.dct_w,
            window_strides=(2, 2), padding=((4, 4), (4, 4)),
            dimension_numbers=("NHWC", "HWIO", "NHWC"),
            precision=jax.lax.Precision.HIGH)                   # (N, sa, sa, 128) f32
        # TODO(synk): moving this fused unfold+DCT into the Pallas kernel (manual
        # DMA of padded image rows) would remove the (N, sa^2, 128) HBM handoff
        # entirely; kept in XLA, but stored bf16 below to halve the kernel HBM read.

        # ---- row tiling: T patch rows per grid step, 2-way split of the
        #      reduction axis so both v7x TensorCores work even at N=1 ----
        T = ((min(max_tile_rows, sa_sq) + 15) // 16) * 16       # bf16 sublane multiple
        tiles_total = -(-sa_sq // T)
        P = 2 if tiles_total >= 2 else 1
        tiles_pp = -(-tiles_total // P)
        rows_pad = P * tiles_pp * T

        pat = dct.reshape(N, sa_sq, KP).astype(self.mxu_dtype)
        if rows_pad != sa_sq:
            pat = jnp.pad(pat, ((0, 0), (0, rows_pad - sa_sq), (0, 0)))
        pat = pat.reshape(N * rows_pad, KP)

        kernel = make_lfs_kernel(T, sa_sq, tiles_pp, KP)
        partials = pl.pallas_call(
            kernel,
            out_shape=jax.ShapeDtypeStruct((N * P * 8, KP), jnp.float32),
            grid=(N, P, tiles_pp),
            in_specs=[
                pl.BlockSpec(
                    (T, KP),
                    lambda n, p, t: (n * (P * tiles_pp) + p * tiles_pp + t, 0)),
                pl.BlockSpec((2 * KP, KP), lambda n, p, t: (0, 0)),
            ],
            out_specs=pl.BlockSpec((8, KP), lambda n, p, t: (n * P + p, 0)),
            compiler_params=pltpu.CompilerParams(
                dimension_semantics=("parallel", "parallel", "arbitrary")),
        )(pat, self.w_band)

        # ---- head finalize (tiny): combine partial sums, average pool, fc ----
        pooled = partials.reshape(N, P * 8, KP).sum(axis=1) * (1.0 / sa_sq)  # (N,128)
        feat = pooled[:, :2 * M]              # [magnitude bands | phase bands]
        # TODO(synk): LFS_xcep.features (pretrained Xception) is unavailable; the
        # head (relu -> global avg pool -> fc) is applied to the LFS feature
        # directly (relu + pool fused in-kernel). nn.Dropout(p=0.2) is identity in eval.
        logits = feat @ self.w_fc + self.b_fc                   # (N, C)
        y = logits
        f = logits            # reference returns (y, f) where both are fc output
        return y, f


if __name__ == "__main__":
    key = jax.random.PRNGKey(0)
    x = jax.random.uniform(key, (2, 3, 32, 32), minval=-1.0, maxval=1.0,
                           dtype=jnp.float32)
    model = FreProcessingPallas(num_classes=2, img_size=32, window_size=10, M=6)

    # default path: one row tile per image
    y, f = model.forward(x)
    jax.block_until_ready((y, f))

    # small forced tile: exercises multi-tile, P=2 split reduction (v7x path),
    # masked tail tile and fully-padded tile; result must match the single-tile run
    y2, f2 = model.forward(x, max_tile_rows=96)
    jax.block_until_ready((y2, f2))

    assert y.shape == (2, 2) and f.shape == (2, 2)
    assert np.allclose(np.asarray(y), np.asarray(y2), rtol=1e-2, atol=1e-2), \
        "tiled vs single-tile mismatch"
    print("KERNEL_OK")
</pallas_src>

<mosaic_0001>
module attributes {stable_mosaic.version = 11 : i64} {
  func.func @kernel(%arg0: i32, %arg1: i32, %arg2: i32, %arg3: memref<256x128xbf16, #tpu.memory_space<vmem>>, %arg4: memref<256x128xbf16, #tpu.memory_space<vmem>>, %arg5: memref<8x128xf32, #tpu.memory_space<vmem>>) attributes {dimension_semantics = [#tpu.dimension_semantics<parallel>, #tpu.dimension_semantics<parallel>, #tpu.dimension_semantics<arbitrary>], iteration_bounds = array<i64: 2, 1, 1>, scalar_prefetch = 0 : i64, scratch_operands = 0 : i64, tpu.core_type = #tpu.core_type<tc>, window_params = [{transform_indices = @transform_0, window_bounds = array<i64: 256, 128>}, {pipeline_mode = #tpu.pipeline_mode<synchronous>, transform_indices = @transform_1, window_bounds = array<i64: 256, 128>}, {transform_indices = @transform_2, window_bounds = array<i64: 8, 128>}]} {
    %c1_i32 = arith.constant 1 : i32
    %0 = arith.muli %arg1, %c1_i32 : i32
    %1 = arith.addi %0, %arg2 : i32
    %c256_i32 = arith.constant 256 : i32
    %2 = arith.muli %1, %c256_i32 : i32
    %c0_i32 = arith.constant 0 : i32
    %3 = arith.cmpi eq, %arg2, %c0_i32 : i32
    %4 = arith.extui %3 : i1 to i32
    %c0_i32_0 = arith.constant 0 : i32
    %5 = arith.cmpi ne, %4, %c0_i32_0 : i32
    scf.if %5 {
      %cst_16 = arith.constant 0.000000e+00 : f32
      %34 = vector.broadcast %cst_16 : f32 to vector<8x128xf32>
      %c0_17 = arith.constant 0 : index
      %c0_18 = arith.constant 0 : index
      %35 = vector.load %arg5[%c0_17, %c0_18] : memref<8x128xf32, #tpu.memory_space<vmem>>, vector<8x128xf32>
      tpu.vector_store %arg5[%c0_17, %c0_18], %34 {strides = array<i32>} : memref<8x128xf32, #tpu.memory_space<vmem>>, vector<8x128xf32>,
    } else {
    }
    %c0 = arith.constant 0 : index
    %c0_1 = arith.constant 0 : index
    %6 = vector.load %arg3[%c0, %c0_1] : memref<256x128xbf16, #tpu.memory_space<vmem>>, vector<256x128xbf16>
    %7 = arith.extf %6 : vector<256x128xbf16> to vector<256x128xf32>
    %8 = math.absf %7 : vector<256x128xf32>
    %cst = arith.constant 1.000000e-15 : f32
    %9 = vector.broadcast %cst : f32 to vector<256x128xf32>
    %10 = arith.addf %8, %9 : vector<256x128xf32>
    %11 = math.log %10 : vector<256x128xf32>
    %cst_2 = arith.constant 0.434294492 : f32
    %12 = vector.broadcast %cst_2 : f32 to vector<256x128xf32>
    %13 = arith.mulf %11, %12 : vector<256x128xf32>
    %cst_3 = arith.constant 0.000000e+00 : f32
    %14 = vector.broadcast %cst_3 : f32 to vector<256x128xf32>
    %15 = arith.cmpf olt, %7, %14 : vector<256x128xf32>
    %cst_4 = arith.constant 0.497149915 : f32
    %cst_5 = arith.constant -15.000001 : f32
    %16 = vector.broadcast %cst_4 : f32 to vector<256x128xf32>
    %17 = vector.broadcast %cst_5 : f32 to vector<256x128xf32>
    %18 = arith.select %15, %16, %17 : vector<256x128xi1>, vector<256x128xf32>
    %19 = arith.truncf %13 : vector<256x128xf32> to vector<256x128xbf16>
    %20 = arith.truncf %18 : vector<256x128xf32> to vector<256x128xbf16>
    %21 = tpu.concatenate %19, %20 in 1 : vector<256x128xbf16>, vector<256x128xbf16> -> vector<256x256xbf16>
    %c0_6 = arith.constant 0 : index
    %c0_7 = arith.constant 0 : index
    %22 = vector.load %arg4[%c0_6, %c0_7] : memref<256x128xbf16, #tpu.memory_space<vmem>>, vector<256x128xbf16>
    %cst_8 = arith.constant dense<0.000000e+00> : vector<256x128xf32>
    %23 = tpu.matmul %21, %22, %cst_8 {dimension_numbers = #tpu.dot_dimension_numbers<[1], [0], [0], [1], [0, 0, 1, 1], [], []>} : vector<256x256xbf16>, vector<256x128xbf16>, vector<256x128xf32> -> vector<256x128xf32>
    %cst_9 = arith.constant 0.000000e+00 : f32
    %24 = vector.broadcast %cst_9 : f32 to vector<256x128xf32>
    %25 = arith.maximumf %23, %24 : vector<256x128xf32>
    %c256_i32_10 = arith.constant 256 : i32
    %26 = arith.addi %2, %c256_i32_10 : i32
    %c256_i32_11 = arith.constant 256 : i32
    %27 = arith.cmpi sle, %26, %c256_i32_11 : i32
    %28 = arith.extui %27 : i1 to i32
    %c0_i32_12 = arith.constant 0 : i32
    %29 = arith.cmpi ne, %28, %c0_i32_12 : i32
    scf.if %29 {
      %c0_16 = arith.constant 0 : index
      %c0_17 = arith.constant 0 : index
      %34 = vector.load %arg5[%c0_16, %c0_17] : memref<8x128xf32, #tpu.memory_space<vmem>>, vector<8x128xf32>
      %35 = vector.shape_cast %25 : vector<256x128xf32> to vector<32x8x128xf32>
      %cst_18 = arith.constant dense<0.000000e+00> : vector<8x128xf32>
      %36 = vector.multi_reduction <add>, %35, %cst_18 [0] : vector<32x8x128xf32> to vector<8x128xf32>
      %37 = arith.addf %34, %36 : vector<8x128xf32>
      %c0_19 = arith.constant 0 : index
      %c0_20 = arith.constant 0 : index
      %38 = vector.load %arg5[%c0_19, %c0_20] : memref<8x128xf32, #tpu.memory_space<vmem>>, vector<8x128xf32>
      tpu.vector_store %arg5[%c0_19, %c0_20], %37 {strides = array<i32>} : memref<8x128xf32, #tpu.memory_space<vmem>>, vector<8x128xf32>,
    } else {
    }
    %c256_i32_13 = arith.constant 256 : i32
    %30 = arith.addi %2, %c256_i32_13 : i32
    %c256_i32_14 = arith.constant 256 : i32
    %31 = arith.cmpi sgt, %30, %c256_i32_14 : i32
    %32 = arith.extui %31 : i1 to i32
    %c0_i32_15 = arith.constant 0 : i32
    %33 = arith.cmpi ne, %32, %c0_i32_15 : i32
    scf.if %33 {
      %34 = tpu.iota {dimensions = array<i32: 0>} : vector<256x1xi32>
      %35 = vector.broadcast %2 : i32 to vector<256x1xi32>
      %36 = arith.addi %35, %34 : vector<256x1xi32>
      %c256_i32_16 = arith.constant 256 : i32
      %37 = vector.broadcast %c256_i32_16 : i32 to vector<256x1xi32>
      %38 = arith.cmpi slt, %36, %37 : vector<256x1xi32>
      %cst_17 = arith.constant 0.000000e+00 : f32
      %39 = vector.shape_cast %38 : vector<256x1xi1> to vector<256x1xi1>
      %40 = vector.broadcast %39 : vector<256x1xi1> to vector<256x128xi1>
      %41 = vector.broadcast %cst_17 : f32 to vector<256x128xf32>
      %42 = arith.select %40, %25, %41 : vector<256x128xi1>, vector<256x128xf32>
      %c0_18 = arith.constant 0 : index
      %c0_19 = arith.constant 0 : index
      %43 = vector.load %arg5[%c0_18, %c0_19] : memref<8x128xf32, #tpu.memory_space<vmem>>, vector<8x128xf32>
      %44 = vector.shape_cast %42 : vector<256x128xf32> to vector<32x8x128xf32>
      %cst_20 = arith.constant dense<0.000000e+00> : vector<8x128xf32>
      %45 = vector.multi_reduction <add>, %44, %cst_20 [0] : vector<32x8x128xf32> to vector<8x128xf32>
      %46 = arith.addf %43, %45 : vector<8x128xf32>
      %c0_21 = arith.constant 0 : index
      %c0_22 = arith.constant 0 : index
      %47 = vector.load %arg5[%c0_21, %c0_22] : memref<8x128xf32, #tpu.memory_space<vmem>>, vector<8x128xf32>
      tpu.vector_store %arg5[%c0_21, %c0_22], %46 {strides = array<i32>} : memref<8x128xf32, #tpu.memory_space<vmem>>, vector<8x128xf32>,
    } else {
    }
    return
  }
  func.func @transform_0(%arg0: i32, %arg1: i32, %arg2: i32) -> (i32, i32) {
    %c1_i32 = arith.constant 1 : i32
    %0 = arith.muli %arg0, %c1_i32 : i32
    %c1_i32_0 = arith.constant 1 : i32
    %1 = arith.muli %arg1, %c1_i32_0 : i32
    %2 = arith.addi %0, %1 : i32
    %3 = arith.addi %2, %arg2 : i32
    %c0_i32 = arith.constant 0 : i32
    %c0_i32_1 = arith.constant 0 : i32
    return %3, %c0_i32 : i32, i32
  }
  func.func @transform_1(%arg0: i32, %arg1: i32, %arg2: i32) -> (i32, i32) {
    %c0_i32 = arith.constant 0 : i32
    %c0_i32_0 = arith.constant 0 : i32
    %c0_i32_1 = arith.constant 0 : i32
    return %c0_i32, %c0_i32_0 : i32, i32
  }
  func.func @transform_2(%arg0: i32, %arg1: i32, %arg2: i32) -> (i32, i32) {
    %c1_i32 = arith.constant 1 : i32
    %0 = arith.muli %arg0, %c1_i32 : i32
    %1 = arith.addi %0, %arg1 : i32
    %c0_i32 = arith.constant 0 : i32
    %c0_i32_0 = arith.constant 0 : i32
    return %1, %c0_i32 : i32, i32
  }
}

</mosaic_0001>

<llo_original>
// kernel: tpu_custom_call.1
$region0: #{tpu_custom_call.1}
  #allocation0 [shape = 'u32[]', space=smem, size = 0x4, offset = 0x4, fixed_abs, tag = 'smem constant byte address 0x4 - core index']
  #allocation1 [shape = 'u32[144,128]{1,0:T(1,128)}', space=vmem, size = 0x12000, scoped, tag = 'internal scratch']
  %s0 = inlined_call_operand.hbm [shape: bf16[512,128], index: 0, kind: input, shape index: {}]
  %s1 = inlined_call_operand.hbm [shape: bf16[256,128], index: 1, kind: input, shape index: {}]
  %s2 = inlined_call_operand.hbm [shape: f32[16,128], index: 2, kind: output, shape index: {}]
  %s3 = sld [smem:[#allocation0]]
  $region61: #{tpu_custom_call.1} parent=0
    _
  %s5 = ssub.s32 1, %s3
  %s6 = scalar_select 0, %s5, %s3
  $region1: #{tpu_custom_call.1} parent=0
    #allocation2 [shape = 'u8[131072]{0}', space=vmem, size = 0x20000, scoped, tag = 'input window, operand 0']
    #allocation3 [shape = 's32[2]{0}', space=sflag, size = 0x8, scoped, tag = 'scoped memory for tpu_custom_call.1']
    #allocation4 [shape = 's32[2]{0}', space=sflag, size = 0x8, scoped, tag = 'scoped memory for tpu_custom_call.1']
    #allocation5 [shape = 'u8[65536]{0}', space=vmem, size = 0x10000, scoped, tag = 'input window, operand 1, single buffered']
    #allocation6 [shape = 's32[1]{0}', space=sflag, size = 0x4, scoped, tag = 'scoped memory for tpu_custom_call.1']
    #allocation7 [shape = 'u8[8192]{0}', space=vmem, size = 0x2000, scoped, tag = 'output window, operand 0']
    %7 = vsyncpa [#allocation3], 0
    %s8 = scalar_lea.sflag [#allocation3], 1
    %9 = vsyncpa %s8, 0
    %10 = vsyncpa [#allocation6], 0
    %11 = vsyncpa [#allocation4], 0
    %s12 = scalar_lea.sflag [#allocation4], 1
    %13 = vsyncpa %s12, 0
    loop: start=0, step=1, limit=4
    $region2: #{tpu_custom_call.1} parent=1 // loop_pre_header
      _
    $region3: #{tpu_custom_call.1} parent=1 // loop_header
      %s15 = sphi 0, %s19
      %p16 = scmp.ge.s32.totalorder %s15, 4
      %s22 = sphi 0, %s41
      %s23 = sphi 0, %s37
      %s24 = sphi 0, %s33
      %s25 = sphi 0, %s22
      %s26 = sphi 0, %s23
      %s27 = sphi 0, %s24
      %s28 = sphi 0, %s25
      %s29 = sphi 0, %s26
      %s30 = sphi 0, %s27
      %s48 = sphi 0, %s50
      %s51 = sphi 0, %s48
      %s52 = sphi 0, %s51
      %s68 = sphi 0, %s52
      %s72 = sphi 0, %s72
      %s74 = sphi 0, %s72
      %s75 = sphi 0, %s74
      %s89 = sphi 0, %s75
      %s97 = sphi 0, %s99
      %s100 = sphi 0, %s97
      %s101 = sphi 0, %s100
      %s117 = sphi 0, %s101
    $region4: #{tpu_custom_call.1} parent=1 // loop_header_branch
      %18 = sbr.rel (%p16) target = $region8
    $region5: #{tpu_custom_call.1} parent=1 // loop_body
      %s20 = ssub.s32 %s15, 1
      %s21 = ssub.s32 %s15, 2
      %s31 = sadd.s32 1, %s24
      %p32 = scmp.ge.s32.totalorder %s31, 1
      %s33 = scalar_select %p32, 0, %s31
      %s34 = sadd.s32 1, %s23
      %s35 = scalar_select %p32, %s34, %s23
      %p36 = scmp.ge.s32.totalorder %s35, 1
      %s37 = scalar_select %p36, 0, %s35
      %s38 = sadd.s32 1, %s22
      %s39 = scalar_select %p36, %s38, %s22
      %p40 = scmp.ge.s32.totalorder %s39, 2
      %s41 = scalar_select %p40, 0, %s39
      %s42 = sadd.s32 %s22, %s23
      %s43 = sadd.s32 %s42, %s24
      %s44 = sadd.s32 %s41, %s37
      %s45 = sadd.s32 %s44, %s33
      %s46 = ssub.s32 %s43, %s45
      %p47 = scmp.eq.s32.totalorder %s46, 0
      %s49 = sadd.s32 %s48, 1
      %s50 = scalar_select %p47, %s48, %s49
      %p53 = pneg %p47
      %p54 = scmp.eq.s32.totalorder %s15, 1
      %p55 = por %p53, %p54
      %p56 = scmp.ne.s32.totalorder %s48, %s51
      %p57 = scmp.eq.s32.totalorder %s15, 0
      %p58 = por %p56, %p57
      %p59 = scmp.ne.s32.totalorder %s48, %s51
      %p60 = scmp.eq.s32.totalorder %s20, 1
      %p61 = por %p59, %p60
      %p62 = scmp.ne.s32.totalorder %s51, %s52
      %p63 = scmp.eq.s32.totalorder %s20, 0
      %p64 = por %p62, %p63
      %p65 = scmp.ne.s32.totalorder %s51, %s52
      %p66 = scmp.eq.s32.totalorder %s21, 1
      %p67 = por %p65, %p66
      %p69 = scmp.ne.s32.totalorder %s52, %s68
      %p70 = scmp.eq.s32.totalorder %s21, 0
      %p71 = por %p69, %p70
      %s73 = sadd.s32 %s72, 1
      %p76 = scmp.eq.s32.totalorder %s15, 1
      %p77 = scmp.ne.s32.totalorder %s72, %s74
      %p78 = scmp.eq.s32.totalorder %s15, 0
      %p79 = por %p77, %p78
      %p80 = scmp.ne.s32.totalorder %s72, %s74
      %p81 = scmp.eq.s32.totalorder %s20, 1
      %p82 = por %p80, %p81
      %p83 = scmp.ne.s32.totalorder %s74, %s75
      %p84 = scmp.eq.s32.totalorder %s20, 0
      %p85 = por %p83, %p84
      %p86 = scmp.ne.s32.totalorder %s74, %s75
      %p87 = scmp.eq.s32.totalorder %s21, 1
      %p88 = por %p86, %p87
      %p90 = scmp.ne.s32.totalorder %s75, %s89
      %p91 = scmp.eq.s32.totalorder %s21, 0
      %p92 = por %p90, %p91
      %s93 = sadd.s32 %s22, %s23
      %s94 = sadd.s32 %s41, %s37
      %s95 = ssub.s32 %s93, %s94
      %p96 = scmp.eq.s32.totalorder %s95, 0
      %s98 = sadd.s32 %s97, 1
      %s99 = scalar_select %p96, %s97, %s98
      %p102 = pneg %p96
      %p103 = scmp.eq.s32.totalorder %s15, 1
      %p104 = por %p102, %p103
      %p105 = scmp.ne.s32.totalorder %s97, %s100
      %p106 = scmp.eq.s32.totalorder %s15, 0
      %p107 = por %p105, %p106
      %p108 = scmp.ne.s32.totalorder %s97, %s100
      %p109 = scmp.eq.s32.totalorder %s20, 1
      %p110 = por %p108, %p109
      %p111 = scmp.ne.s32.totalorder %s100, %s101
      %p112 = scmp.eq.s32.totalorder %s20, 0
      %p113 = por %p111, %p112
      %p114 = scmp.ne.s32.totalorder %s100, %s101
      %p115 = scmp.eq.s32.totalorder %s21, 1
      %p116 = por %p114, %p115
      %p118 = scmp.ne.s32.totalorder %s101, %s117
      %p119 = scmp.eq.s32.totalorder %s21, 0
      %p120 = por %p118, %p119
      %p121 = scmp.le.s32.totalorder 1, %s15
      %p122 = scmp.lt.s32.totalorder %s15, 3
      %p123 = pnand %p121, %p122
      %p124 = pneg %p123
      // Predicated region
      $region9: #{tpu_custom_call.1} parent=5 // pred_check
        _
      $region10: #{tpu_custom_call.1} parent=5 // pred_check_branch
        %126 = sbr.rel (%p123) target = $region12
      $region11: #{tpu_custom_call.1} parent=5 // pred_region
        %s127 = ssub.s32 %s15, 1
        // Predicated region
        $region13: #{tpu_custom_call.1} parent=11 // pred_check
          %p128 = pneg %p85
        $region14: #{tpu_custom_call.1} parent=11 // pred_check_branch
          %130 = sbr.rel (%p128) target = $region16
        $region15: #{tpu_custom_call.1} parent=11 // pred_region
          %s132 = ssub.s32 2048, 2048
          %133 = vsyncadd [#allocation6], %s132
          %s134 = sshll.u32 [#allocation5], 4
          %s135 = int_to_ptr.vmem [resolvable:$true] %s134
          %140 = dma.hbm_to_vmem [thread:$0]  %s1, 2048, %s135, [#allocation6], 64, 64, 4
        $region16: #{tpu_custom_call.1} parent=11 // pred_fallthru
          _
      $region12: #{tpu_custom_call.1} parent=5 // pred_fallthru
        _
      %p141 = scmp.lt.s32.totalorder %s15, 2
      // Predicated region
      $region17: #{tpu_custom_call.1} parent=5 // pred_check
        %p142 = pneg %p141
      $region18: #{tpu_custom_call.1} parent=5 // pred_check_branch
        %144 = sbr.rel (%p142) target = $region20
      $region19: #{tpu_custom_call.1} parent=5 // pred_region
        // Predicated region
        $region21: #{tpu_custom_call.1} parent=19 // pred_check
          %p145 = pneg %p58
        $region22: #{tpu_custom_call.1} parent=19 // pred_check_branch
          %147 = sbr.rel (%p145) target = $region24
        $region23: #{tpu_custom_call.1} parent=19 // pred_region
          %s148 = sand.u32 %s48, 1
          %s149 = scalar_lea.sflag [#allocation3], %s148
          %s150 = sand.u32 %s48, 1
          %s151 = smul.addr %s150, 128
          %s152 = scalar_lea.vmem [#allocation2], %s151
          %s153 = sadd.s32 %s22, %s23
          %s154 = sadd.s32 %s153, %s24
          %s155 = smul.u32 32, %s154
          %s157 = ssub.s32 2048, 2048
          %158 = vsyncadd %s149, %s157
          %s159 = smul.addr %s155, 64
          %s160 = scalar_lea.hbm %s0, %s159
          %s161 = sshll.u32 %s152, 4
          %s162 = int_to_ptr.vmem [resolvable:$true] %s161
          %167 = dma.hbm_to_vmem [thread:$0]  %s160, 2048, %s162, %s149, 64, 64, 4
        $region24: #{tpu_custom_call.1} parent=19 // pred_fallthru
          _
      $region20: #{tpu_custom_call.1} parent=5 // pred_fallthru
        _
      %p168 = scmp.le.s32.totalorder 1, %s15
      %p169 = scmp.lt.s32.totalorder %s15, 3
      %p170 = pnand %p168, %p169
      %p171 = pneg %p170
      // Predicated region
      $region25: #{tpu_custom_call.1} parent=5 // pred_check
        _
      $region26: #{tpu_custom_call.1} parent=5 // pred_check_branch
        %173 = sbr.rel (%p170) target = $region28
      $region27: #{tpu_custom_call.1} parent=5 // pred_region
        %s174 = ssub.s32 %s15, 1
        %s175 = sand.u32 %s51, 1
        %s176 = scalar_lea.sflag [#allocation3], %s175
        %s177 = sand.u32 %s51, 1
        %s178 = smul.addr %s177, 128
        %s179 = scalar_lea.vmem [#allocation2], %s178
        // Predicated region
        $region29: #{tpu_custom_call.1} parent=27 // pred_check
          %p180 = pneg %p64
        $region30: #{tpu_custom_call.1} parent=27 // pred_check_branch
          %182 = sbr.rel (%p180) target = $region32
        $region31: #{tpu_custom_call.1} parent=27 // pred_region
          %183 = dma.done %s176, 2048
        $region32: #{tpu_custom_call.1} parent=27 // pred_fallthru
          _
        // Predicated region
        $region33: #{tpu_custom_call.1} parent=27 // pred_check
          %p184 = pneg %p85
        $region34: #{tpu_custom_call.1} parent=27 // pred_check_branch
          %186 = sbr.rel (%p184) target = $region36
        $region35: #{tpu_custom_call.1} parent=27 // pred_region
          %187 = dma.done [#allocation6], 2048
        $region36: #{tpu_custom_call.1} parent=27 // pred_fallthru
          _
        %s188 = sand.u32 %s51, 1
        %s189 = scalar_lea.sflag [#allocation3], %s188
        %s190 = sand.u32 %s51, 1
        %s191 = smul.addr %s190, 128
        %s192 = scalar_lea.vmem [#allocation2], %s191
        %p193 = pneg %p64
        %p194 = pneg %p61
        %p195 = pneg %p85
        %p196 = pneg %p82
        %p197 = pneg %p113
        %p198 = pneg %p110
        %s199 = sand.u32 %s100, 1
        %s200 = scalar_lea.sflag [#allocation4], %s199
        %s201 = sand.u32 %s100, 1
        %s202 = smul.addr %s201, 8
        %s203 = scalar_lea.vmem [#allocation7], %s202
        %s204 = sadd.s32 %s25, %s26
        %s205 = sadd.s32 %s204, %s27
        %s206 = smul.u32 32, %s205
        %s207 = sadd.s32 %s25, %s26
        %s209 = sadd.s32 %s26, %s27
        %s210 = smul.u32 %s209, 256
        %p211 = scmp.eq.s32.totalorder %s27, 0
        // Predicated region
        $region37: #{tpu_custom_call.1} parent=27 // pred_check
          %p212 = pneg %p211
        $region38: #{tpu_custom_call.1} parent=27 // pred_check_branch
          %214 = sbr.rel (%p212) target = $region40
        $region39: #{tpu_custom_call.1} parent=27 // pred_region
          %215 = vst [vmem:[%s203] sm:$0xff] 0.0
        $region40: #{tpu_custom_call.1} parent=27 // pred_fallthru
          _
        %v216 = vld [vmem:[%s179] sm:$0xf]
        %v217 = vld [vmem:[%s179 + $0x4] sm:$0xf]
        %v218 = vld [vmem:[%s179 + $0x8] sm:$0xf]
        %v219 = vld [vmem:[%s179 + $0xc] sm:$0xf]
        %v220 = vld [vmem:[%s179 + $0x10] sm:$0xf]
        %v221 = vld [vmem:[%s179 + $0x14] sm:$0xf]
        %v222 = vld [vmem:[%s179 + $0x18] sm:$0xf]
        %v223 = vld [vmem:[%s179 + $0x1c] sm:$0xf]
        %v224 = vld [vmem:[%s179 + $0x20] sm:$0xf]
        %v225 = vld [vmem:[%s179 + $0x24] sm:$0xf]
        %v226 = vld [vmem:[%s179 + $0x28] sm:$0xf]
        %v227 = vld [vmem:[%s179 + $0x2c] sm:$0xf]
        %v228 = vld [vmem:[%s179 + $0x30] sm:$0xf]
        %v229 = vld [vmem:[%s179 + $0x34] sm:$0xf]
        %v230 = vld [vmem:[%s179 + $0x38] sm:$0xf]
        %v231 = vld [vmem:[%s179 + $0x3c] sm:$0xf]
        %v232 = vld [vmem:[%s179 + $0x40] sm:$0xf]
        %v233 = vld [vmem:[%s179 + $0x44] sm:$0xf]
        %v234 = vld [vmem:[%s179 + $0x48] sm:$0xf]
        %v235 = vld [vmem:[%s179 + $0x4c] sm:$0xf]
        %v236 = vld [vmem:[%s179 + $0x50] sm:$0xf]
        %v237 = vld [vmem:[%s179 + $0x54] sm:$0xf]
        %v238 = vld [vmem:[%s179 + $0x58] sm:$0xf]
        %v239 = vld [vmem:[%s179 + $0x5c] sm:$0xf]
        %v240 = vld [vmem:[%s179 + $0x60] sm:$0xf]
        %v241 = vld [vmem:[%s179 + $0x64] sm:$0xf]
        %v242 = vld [vmem:[%s179 + $0x68] sm:$0xf]
        %v243 = vld [vmem:[%s179 + $0x6c] sm:$0xf]
        %v244 = vld [vmem:[%s179 + $0x70] sm:$0xf]
        %v245 = vld [vmem:[%s179 + $0x74] sm:$0xf]
        %v246 = vld [vmem:[%s179 + $0x78] sm:$0xf]
        %v247 = vld [vmem:[%s179 + $0x7c] sm:$0xf]
        %v248 = vunpack.c.l.bf16 %v216
        %v249 = vunpack.c.l.bf16 %v217
        %v250 = vunpack.c.l.bf16 %v218
        %v251 = vunpack.c.l.bf16 %v219
        %v252 = vunpack.c.l.bf16 %v220
        %v253 = vunpack.c.l.bf16 %v221
        %v254 = vunpack.c.l.bf16 %v222
        %v255 = vunpack.c.l.bf16 %v223
        %v256 = vunpack.c.l.bf16 %v224
        %v257 = vunpack.c.l.bf16 %v225
        %v258 = vunpack.c.l.bf16 %v226
        %v259 = vunpack.c.l.bf16 %v227
        %v260 = vunpack.c.l.bf16 %v228
        %v261 = vunpack.c.l.bf16 %v229
        %v262 = vunpack.c.l.bf16 %v230
        %v263 = vunpack.c.l.bf16 %v231
        %v264 = vunpack.c.l.bf16 %v232
        %v265 = vunpack.c.l.bf16 %v233
        %v266 = vunpack.c.l.bf16 %v234
        %v267 = vunpack.c.l.bf16 %v235
        %v268 = vunpack.c.l.bf16 %v236
        %v269 = vunpack.c.l.bf16 %v237
        %v270 = vunpack.c.l.bf16 %v238
        %v271 = vunpack.c.l.bf16 %v239
        %v272 = vunpack.c.l.bf16 %v240
        %v273 = vunpack.c.l.bf16 %v241
        %v274 = vunpack.c.l.bf16 %v242
        %v275 = vunpack.c.l.bf16 %v243
        %v276 = vunpack.c.l.bf16 %v244
        %v277 = vunpack.c.l.bf16 %v245
        %v278 = vunpack.c.l.bf16 %v246
        %v279 = vunpack.c.l.bf16 %v247
        %v280 = vand.u32 2147483647, %v248
        %v281 = vand.u32 2147483647, %v249
        %v282 = vand.u32 2147483647, %v250
        %v283 = vand.u32 2147483647, %v251
        %v284 = vand.u32 2147483647, %v252
        %v285 = vand.u32 2147483647, %v253
        %v286 = vand.u32 2147483647, %v254
        %v287 = vand.u32 2147483647, %v255
        %v288 = vand.u32 2147483647, %v256
        %v289 = vand.u32 2147483647, %v257
        %v290 = vand.u32 2147483647, %v258
        %v291 = vand.u32 2147483647, %v259
        %v292 = vand.u32 2147483647, %v260
        %v293 = vand.u32 2147483647, %v261
        %v294 = vand.u32 2147483647, %v262
        %v295 = vand.u32 2147483647, %v263
        %v296 = vand.u32 2147483647, %v264
        %v297 = vand.u32 2147483647, %v265
        %v298 = vand.u32 2147483647, %v266
        %v299 = vand.u32 2147483647, %v267
        %v300 = vand.u32 2147483647, %v268
        %v301 = vand.u32 2147483647, %v269
        %v302 = vand.u32 2147483647, %v270
        %v303 = vand.u32 2147483647, %v271
        %v304 = vand.u32 2147483647, %v272
        %v305 = vand.u32 2147483647, %v273
        %v306 = vand.u32 2147483647, %v274
        %v307 = vand.u32 2147483647, %v275
        %v308 = vand.u32 2147483647, %v276
        %v309 = vand.u32 2147483647, %v277
        %v310 = vand.u32 2147483647, %v278
        %v311 = vand.u32 2147483647, %v279
        %v312 = vadd.f32 %v280, 1e-15
        %v313 = vadd.f32 %v281, 1e-15
        %v314 = vadd.f32 %v282, 1e-15
        %v315 = vadd.f32 %v283, 1e-15
        %v316 = vadd.f32 %v284, 1e-15
        %v317 = vadd.f32 %v285, 1e-15
        %v318 = vadd.f32 %v286, 1e-15
        %v319 = vadd.f32 %v287, 1e-15
        %v320 = vadd.f32 %v288, 1e-15
        %v321 = vadd.f32 %v289, 1e-15
        %v322 = vadd.f32 %v290, 1e-15
        %v323 = vadd.f32 %v291, 1e-15
        %v324 = vadd.f32 %v292, 1e-15
        %v325 = vadd.f32 %v293, 1e-15
        %v326 = vadd.f32 %v294, 1e-15
        %v327 = vadd.f32 %v295, 1e-15
        %v328 = vadd.f32 %v296, 1e-15
        %v329 = vadd.f32 %v297, 1e-15
        %v330 = vadd.f32 %v298, 1e-15
        %v331 = vadd.f32 %v299, 1e-15
        %v332 = vadd.f32 %v300, 1e-15
        %v333 = vadd.f32 %v301, 1e-15
        %v334 = vadd.f32 %v302, 1e-15
        %v335 = vadd.f32 %v303, 1e-15
        %v336 = vadd.f32 %v304, 1e-15
        %v337 = vadd.f32 %v305, 1e-15
        %v338 = vadd.f32 %v306, 1e-15
        %v339 = vadd.f32 %v307, 1e-15
        %v340 = vadd.f32 %v308, 1e-15
        %v341 = vadd.f32 %v309, 1e-15
        %v342 = vadd.f32 %v310, 1e-15
        %v343 = vadd.f32 %v311, 1e-15
        %v344 = vlog2.pop %v312
        %v345 = vmul.f32 %v344, 0.6931472
        %v346 = vlog2.pop %v313
        %v347 = vmul.f32 %v346, 0.6931472
        %v348 = vlog2.pop %v314
        %v349 = vmul.f32 %v348, 0.6931472
        %v350 = vlog2.pop %v315
        %v351 = vmul.f32 %v350, 0.6931472
        %v352 = vlog2.pop %v316
        %v353 = vmul.f32 %v352, 0.6931472
        %v354 = vlog2.pop %v317
        %v355 = vmul.f32 %v354, 0.6931472
        %v356 = vlog2.pop %v318
        %v357 = vmul.f32 %v356, 0.6931472
        %v358 = vlog2.pop %v319
        %v359 = vmul.f32 %v358, 0.6931472
        %v360 = vlog2.pop %v320
        %v361 = vmul.f32 %v360, 0.6931472
        %v362 = vlog2.pop %v321
        %v363 = vmul.f32 %v362, 0.6931472
        %v364 = vlog2.pop %v322
        %v365 = vmul.f32 %v364, 0.6931472
        %v366 = vlog2.pop %v323
        %v367 = vmul.f32 %v366, 0.6931472
        %v368 = vlog2.pop %v324
        %v369 = vmul.f32 %v368, 0.6931472
        %v370 = vlog2.pop %v325
        %v371 = vmul.f32 %v370, 0.6931472
        %v372 = vlog2.pop %v326
        %v373 = vmul.f32 %v372, 0.6931472
        %v374 = vlog2.pop %v327
        %v375 = vmul.f32 %v374, 0.6931472
        %v376 = vlog2.pop %v328
        %v377 = vmul.f32 %v376, 0.6931472
        %v378 = vlog2.pop %v329
        %v379 = vmul.f32 %v378, 0.6931472
        %v380 = vlog2.pop %v330
        %v381 = vmul.f32 %v380, 0.6931472
        %v382 = vlog2.pop %v331
        %v383 = vmul.f32 %v382, 0.6931472
        %v384 = vlog2.pop %v332
        %v385 = vmul.f32 %v384, 0.6931472
        %v386 = vlog2.pop %v333
        %v387 = vmul.f32 %v386, 0.6931472
        %v388 = vlog2.pop %v334
        %v389 = vmul.f32 %v388, 0.6931472
        %v390 = vlog2.pop %v335
        %v391 = vmul.f32 %v390, 0.6931472
        %v392 = vlog2.pop %v336
        %v393 = vmul.f32 %v392, 0.6931472
        %v394 = vlog2.pop %v337
        %v395 = vmul.f32 %v394, 0.6931472
        %v396 = vlog2.pop %v338
        %v397 = vmul.f32 %v396, 0.6931472
        %v398 = vlog2.pop %v339
        %v399 = vmul.f32 %v398, 0.6931472
        %v400 = vlog2.pop %v340
        %v401 = vmul.f32 %v400, 0.6931472
        %v402 = vlog2.pop %v341
        %v403 = vmul.f32 %v402, 0.6931472
        %v404 = vlog2.pop %v342
        %v405 = vmul.f32 %v404, 0.6931472
        %v406 = vlog2.pop %v343
        %v407 = vmul.f32 %v406, 0.6931472
        %v408 = vmul.f32 %v345, 0.4342945
        %v409 = vmul.f32 %v347, 0.4342945
        %v410 = vmul.f32 %v349, 0.4342945
        %v411 = vmul.f32 %v351, 0.4342945
        %v412 = vmul.f32 %v353, 0.4342945
        %v413 = vmul.f32 %v355, 0.4342945
        %v414 = vmul.f32 %v357, 0.4342945
        %v415 = vmul.f32 %v359, 0.4342945
        %v416 = vmul.f32 %v361, 0.4342945
        %v417 = vmul.f32 %v363, 0.4342945
        %v418 = vmul.f32 %v365, 0.4342945
        %v419 = vmul.f32 %v367, 0.4342945
        %v420 = vmul.f32 %v369, 0.4342945
        %v421 = vmul.f32 %v371, 0.4342945
        %v422 = vmul.f32 %v373, 0.4342945
        %v423 = vmul.f32 %v375, 0.4342945
        %v424 = vmul.f32 %v377, 0.4342945
        %v425 = vmul.f32 %v379, 0.4342945
        %v426 = vmul.f32 %v381, 0.4342945
        %v427 = vmul.f32 %v383, 0.4342945
        %v428 = vmul.f32 %v385, 0.4342945
        %v429 = vmul.f32 %v387, 0.4342945
        %v430 = vmul.f32 %v389, 0.4342945
        %v431 = vmul.f32 %v391, 0.4342945
        %v432 = vmul.f32 %v393, 0.4342945
        %v433 = vmul.f32 %v395, 0.4342945
        %v434 = vmul.f32 %v397, 0.4342945
        %v435 = vmul.f32 %v399, 0.4342945
        %v436 = vmul.f32 %v401, 0.4342945
        %v437 = vmul.f32 %v403, 0.4342945
        %v438 = vmul.f32 %v405, 0.4342945
        %v439 = vmul.f32 %v407, 0.4342945
        %vm440 = vcmp.lt.f32.partialorder %v248, 0.0
        %vm441 = vcmp.lt.f32.partialorder %v249, 0.0
        %vm442 = vcmp.lt.f32.partialorder %v250, 0.0
        %vm443 = vcmp.lt.f32.partialorder %v251, 0.0
        %vm444 = vcmp.lt.f32.partialorder %v252, 0.0
        %vm445 = vcmp.lt.f32.partialorder %v253, 0.0
        %vm446 = vcmp.lt.f32.partialorder %v254, 0.0
        %vm447 = vcmp.lt.f32.partialorder %v255, 0.0
        %vm448 = vcmp.lt.f32.partialorder %v256, 0.0
        %vm449 = vcmp.lt.f32.partialorder %v257, 0.0
        %vm450 = vcmp.lt.f32.partialorder %v258, 0.0
        %vm451 = vcmp.lt.f32.partialorder %v259, 0.0
        %vm452 = vcmp.lt.f32.partialorder %v260, 0.0
        %vm453 = vcmp.lt.f32.partialorder %v261, 0.0
        %vm454 = vcmp.lt.f32.partialorder %v262, 0.0
        %vm455 = vcmp.lt.f32.partialorder %v263, 0.0
        %vm456 = vcmp.lt.f32.partialorder %v264, 0.0
        %vm457 = vcmp.lt.f32.partialorder %v265, 0.0
        %vm458 = vcmp.lt.f32.partialorder %v266, 0.0
        %vm459 = vcmp.lt.f32.partialorder %v267, 0.0
        %vm460 = vcmp.lt.f32.partialorder %v268, 0.0
        %vm461 = vcmp.lt.f32.partialorder %v269, 0.0
        %vm462 = vcmp.lt.f32.partialorder %v270, 0.0
        %vm463 = vcmp.lt.f32.partialorder %v271, 0.0
        %vm464 = vcmp.lt.f32.partialorder %v272, 0.0
        %vm465 = vcmp.lt.f32.partialorder %v273, 0.0
        %vm466 = vcmp.lt.f32.partialorder %v274, 0.0
        %vm467 = vcmp.lt.f32.partialorder %v275, 0.0
        %vm468 = vcmp.lt.f32.partialorder %v276, 0.0
        %vm469 = vcmp.lt.f32.partialorder %v277, 0.0
        %vm470 = vcmp.lt.f32.partialorder %v278, 0.0
        %vm471 = vcmp.lt.f32.partialorder %v279, 0.0
        %v472 = vsel %vm440, 0.4971499, -15.000001
        %v473 = vsel %vm441, 0.4971499, -15.000001
        %v474 = vsel %vm442, 0.4971499, -15.000001
        %v475 = vsel %vm443, 0.4971499, -15.000001
        %v476 = vsel %vm444, 0.4971499, -15.000001
        %v477 = vsel %vm445, 0.4971499, -15.000001
        %v478 = vsel %vm446, 0.4971499, -15.000001
        %v479 = vsel %vm447, 0.4971499, -15.000001
        %v480 = vsel %vm448, 0.4971499, -15.000001
        %v481 = vsel %vm449, 0.4971499, -15.000001
        %v482 = vsel %vm450, 0.4971499, -15.000001
        %v483 = vsel %vm451, 0.4971499, -15.000001
        %v484 = vsel %vm452, 0.4971499, -15.000001
        %v485 = vsel %vm453, 0.4971499, -15.000001
        %v486 = vsel %vm454, 0.4971499, -15.000001
        %v487 = vsel %vm455, 0.4971499, -15.000001
        %v488 = vsel %vm456, 0.4971499, -15.000001
        %v489 = vsel %vm457, 0.4971499, -15.000001
        %v490 = vsel %vm458, 0.4971499, -15.000001
        %v491 = vsel %vm459, 0.4971499, -15.000001
        %v492 = vsel %vm460, 0.4971499, -15.000001
        %v493 = vsel %vm461, 0.4971499, -15.000001
        %v494 = vsel %vm462, 0.4971499, -15.000001
        %v495 = vsel %vm463, 0.4971499, -15.000001
        %v496 = vsel %vm464, 0.4971499, -15.000001
        %v497 = vsel %vm465, 0.4971499, -15.000001
        %v498 = vsel %vm466, 0.4971499, -15.000001
        %v499 = vsel %vm467, 0.4971499, -15.000001
        %v500 = vsel %vm468, 0.4971499, -15.000001
        %v501 = vsel %vm469, 0.4971499, -15.000001
        %v502 = vsel %vm470, 0.4971499, -15.000001
        %v503 = vsel %vm471, 0.4971499, -15.000001
        %v504 = vpack.c.bf16 %v409, %v408
        %v505 = vpack.c.bf16 %v411, %v410
        %v506 = vpack.c.bf16 %v413, %v412
        %v507 = vpack.c.bf16 %v415, %v414
        %v508 = vpack.c.bf16 %v417, %v416
        %v509 = vpack.c.bf16 %v419, %v418
        %v510 = vpack.c.bf16 %v421, %v420
        %v511 = vpack.c.bf16 %v423, %v422
        %v512 = vpack.c.bf16 %v425, %v424
        %v513 = vpack.c.bf16 %v427, %v426
        %v514 = vpack.c.bf16 %v429, %v428
        %v515 = vpack.c.bf16 %v431, %v430
        %v516 = vpack.c.bf16 %v433, %v432
        %v517 = vpack.c.bf16 %v435, %v434
        %v518 = vpack.c.bf16 %v437, %v436
        %v519 = vpack.c.bf16 %v439, %v438
        %v520 = vpack.c.bf16 %v473, %v472
        %v521 = vpack.c.bf16 %v475, %v474
        %v522 = vpack.c.bf16 %v477, %v476
        %v523 = vpack.c.bf16 %v479, %v478
        %v524 = vpack.c.bf16 %v481, %v480
        %v525 = vpack.c.bf16 %v483, %v482
        %v526 = vpack.c.bf16 %v485, %v484
        %v527 = vpack.c.bf16 %v487, %v486
        %v528 = vpack.c.bf16 %v489, %v488
        %v529 = vpack.c.bf16 %v491, %v490
        %v530 = vpack.c.bf16 %v493, %v492
        %v531 = vpack.c.bf16 %v495, %v494
        %v532 = vpack.c.bf16 %v497, %v496
        %v533 = vpack.c.bf16 %v499, %v498
        %v534 = vpack.c.bf16 %v501, %v500
        %v535 = vpack.c.bf16 %v503, %v502
        %v536 = vld [vmem:[#allocation5] sm:$0xf]
        %v537 = vld [vmem:[#allocation5 + $0x4] sm:$0xf]
        %v538 = vld [vmem:[#allocation5 + $0x8] sm:$0xf]
        %v539 = vld [vmem:[#allocation5 + $0xc] sm:$0xf]
        %v540 = vld [vmem:[#allocation5 + $0x10] sm:$0xf]
        %v541 = vld [vmem:[#allocation5 + $0x14] sm:$0xf]
        %v542 = vld [vmem:[#allocation5 + $0x18] sm:$0xf]
        %v543 = vld [vmem:[#allocation5 + $0x1c] sm:$0xf]
        %v544 = vld [vmem:[#allocation5 + $0x20] sm:$0xf]
        %v545 = vld [vmem:[#allocation5 + $0x24] sm:$0xf]
        %v546 = vld [vmem:[#allocation5 + $0x28] sm:$0xf]
        %v547 = vld [vmem:[#allocation5 + $0x2c] sm:$0xf]
        %v548 = vld [vmem:[#allocation5 + $0x30] sm:$0xf]
        %v549 = vld [vmem:[#allocation5 + $0x34] sm:$0xf]
        %v550 = vld [vmem:[#allocation5 + $0x38] sm:$0xf]
        %v551 = vld [vmem:[#allocation5 + $0x3c] sm:$0xf]
        %v552 = vld [vmem:[#allocation5 + $0x40] sm:$0xf]
        %v553 = vld [vmem:[#allocation5 + $0x44] sm:$0xf]
        %v554 = vld [vmem:[#allocation5 + $0x48] sm:$0xf]
        %v555 = vld [vmem:[#allocation5 + $0x4c] sm:$0xf]
        %v556 = vld [vmem:[#allocation5 + $0x50] sm:$0xf]
        %v557 = vld [vmem:[#allocation5 + $0x54] sm:$0xf]
        %v558 = vld [vmem:[#allocation5 + $0x58] sm:$0xf]
        %v559 = vld [vmem:[#allocation5 + $0x5c] sm:$0xf]
        %v560 = vld [vmem:[#allocation5 + $0x60] sm:$0xf]
        %v561 = vld [vmem:[#allocation5 + $0x64] sm:$0xf]
        %v562 = vld [vmem:[#allocation5 + $0x68] sm:$0xf]
        %v563 = vld [vmem:[#allocation5 + $0x6c] sm:$0xf]
        %v564 = vld [vmem:[#allocation5 + $0x70] sm:$0xf]
        %v565 = vld [vmem:[#allocation5 + $0x74] sm:$0xf]
        %v566 = vld [vmem:[#allocation5 + $0x78] sm:$0xf]
        %v567 = vld [vmem:[#allocation5 + $0x7c] sm:$0xf]
        %v600 = vunpack.c.l.b16 %v536
        %v601 = vunpack.c.l.b16 %v537
        %v602 = vunpack.c.l.b16 %v538
        %v603 = vunpack.c.l.b16 %v539
        %v604 = vunpack.c.l.b16 %v540
        %v605 = vunpack.c.l.b16 %v541
        %v606 = vunpack.c.l.b16 %v542
        %v607 = vunpack.c.l.b16 %v543
        %v608 = vunpack.c.l.b16 %v544
        %v609 = vunpack.c.l.b16 %v545
        %v610 = vunpack.c.l.b16 %v546
        %v611 = vunpack.c.l.b16 %v547
        %v612 = vunpack.c.l.b16 %v548
        %v613 = vunpack.c.l.b16 %v549
        %v614 = vunpack.c.l.b16 %v550
        %v615 = vunpack.c.l.b16 %v551
        %v616 = vunpack.c.l.b16 %v552
        %v617 = vunpack.c.l.b16 %v553
        %v618 = vunpack.c.l.b16 %v554
        %v619 = vunpack.c.l.b16 %v555
        %v620 = vunpack.c.l.b16 %v556
        %v621 = vunpack.c.l.b16 %v557
        %v622 = vunpack.c.l.b16 %v558
        %v623 = vunpack.c.l.b16 %v559
        %v624 = vunpack.c.l.b16 %v560
        %v625 = vunpack.c.l.b16 %v561
        %v626 = vunpack.c.l.b16 %v562
        %v627 = vunpack.c.l.b16 %v563
        %v628 = vunpack.c.l.b16 %v564
        %v629 = vunpack.c.l.b16 %v565
        %v630 = vunpack.c.l.b16 %v566
        %v631 = vunpack.c.l.b16 %v567
        %v632 = vpack.c.b16 %v601, %v600
        %v633 = vpack.c.b16 %v603, %v602
        %v634 = vpack.c.b16 %v605, %v604
        %v635 = vpack.c.b16 %v607, %v606
        %v636 = vpack.c.b16 %v609, %v608
        %v637 = vpack.c.b16 %v611, %v610
        %v638 = vpack.c.b16 %v613, %v612
        %v639 = vpack.c.b16 %v615, %v614
        %v640 = vpack.c.b16 %v617, %v616
        %v641 = vpack.c.b16 %v619, %v618
        %v642 = vpack.c.b16 %v621, %v620
        %v643 = vpack.c.b16 %v623, %v622
        %v644 = vpack.c.b16 %v625, %v624
        %v645 = vpack.c.b16 %v627, %v626
        %v646 = vpack.c.b16 %v629, %v628
        %v647 = vpack.c.b16 %v631, %v630
        %664 = vmatprep.subr.bf16.mxu0 0
        %665 = vmatpush1.bf16.msra.mxu0 %v632
        %666 = vmatprep.subr.bf16.mxu0 0
        %667 = vmatpush1.bf16.msra.mxu0 %v633
        %668 = vmatprep.subr.bf16.mxu0 0
        %669 = vmatpush1.bf16.msra.mxu0 %v634
        %670 = vmatprep.subr.bf16.mxu0 0
        %671 = vmatpush1.bf16.msra.mxu0 %v635
        %672 = vmatprep.subr.bf16.mxu0 0
        %673 = vmatpush1.bf16.msra.mxu0 %v636
        %674 = vmatprep.subr.bf16.mxu0 0
        %675 = vmatpush1.bf16.msra.mxu0 %v637
        %676 = vmatprep.subr.bf16.mxu0 0
        %677 = vmatpush1.bf16.msra.mxu0 %v638
        %678 = vmatprep.subr.bf16.mxu0 0
        %679 = vmatpush1.bf16.msra.mxu0 %v639
        %680 = vmatprep.subr.bf16.mxu0 0
        %681 = vmatpush1.bf16.msra.mxu0 %v640
        %682 = vmatprep.subr.bf16.mxu0 0
        %683 = vmatpush1.bf16.msra.mxu0 %v641
        %684 = vmatprep.subr.bf16.mxu0 0
        %685 = vmatpush1.bf16.msra.mxu0 %v642
        %686 = vmatprep.subr.bf16.mxu0 0
        %687 = vmatpush1.bf16.msra.mxu0 %v643
        %688 = vmatprep.subr.bf16.mxu0 0
        %689 = vmatpush1.bf16.msra.mxu0 %v644
        %690 = vmatprep.subr.bf16.mxu0 0
        %691 = vmatpush1.bf16.msra.mxu0 %v645
        %692 = vmatprep.subr.bf16.mxu0 0
        %693 = vmatpush1.bf16.msra.mxu0 %v646
        %694 = vmatprep.subr.bf16.mxu0 0
        %695 = vmatpush1.bf16.msra.mxu0 %v647
        %696 = vmatprep.mubr.bf16.mxu0 %v520
        %697 = vmatmul.mubr.bf16.gmra.mrb[0].mxu0 %v504
        %v698 = vpop.f32.mrb[0].mxu0
        %v699 = vadd.f32 0.0, %v698
        %v700 = vpop.f32.mrb[0].mxu0
        %v701 = vpop.f32.mrb[0].mxu0
        %v702 = vadd.f32 0.0, %v701
        %v703 = vpop.f32.mrb[0].mxu0
        %704 = vmatprep.mubr.bf16.mxu0 %v521
        %705 = vmatmul.mubr.bf16.gmra.mrb[0].mxu0 %v505
        %v706 = vpop.f32.mrb[0].mxu0
        %v707 = vadd.f32 0.0, %v706
        %v708 = vpop.f32.mrb[0].mxu0
        %v709 = vpop.f32.mrb[0].mxu0
        %v710 = vadd.f32 0.0, %v709
        %v711 = vpop.f32.mrb[0].mxu0
        %712 = vmatprep.mubr.bf16.mxu0 %v522
        %713 = vmatmul.mubr.bf16.gmra.mrb[0].mxu0 %v506
        %v714 = vpop.f32.mrb[0].mxu0
        %v715 = vadd.f32 0.0, %v714
        %v716 = vpop.f32.mrb[0].mxu0
        %v717 = vpop.f32.mrb[0].mxu0
        %v718 = vadd.f32 0.0, %v717
        %v719 = vpop.f32.mrb[0].mxu0
        %720 = vmatprep.mubr.bf16.mxu0 %v523
        %721 = vmatmul.mubr.bf16.gmra.mrb[0].mxu0 %v507
        %v722 = vpop.f32.mrb[0].mxu0
        %v723 = vadd.f32 0.0, %v722
        %v724 = vpop.f32.mrb[0].mxu0
        %v725 = vpop.f32.mrb[0].mxu0
        %v726 = vadd.f32 0.0, %v725
        %v727 = vpop.f32.mrb[0].mxu0
        %728 = vmatprep.mubr.bf16.mxu0 %v524
        %729 = vmatmul.mubr.bf16.gmra.mrb[0].mxu0 %v508
        %v730 = vpop.f32.mrb[0].mxu0
        %v731 = vadd.f32 0.0, %v730
        %v732 = vpop.f32.mrb[0].mxu0
        %v733 = vpop.f32.mrb[0].mxu0
        %v734 = vadd.f32 0.0, %v733
        %v735 = vpop.f32.mrb[0].mxu0
        %736 = vmatprep.mubr.bf16.mxu0 %v525
        %737 = vmatmul.mubr.bf16.gmra.mrb[0].mxu0 %v509
        %v738 = vpop.f32.mrb[0].mxu0
        %v739 = vadd.f32 0.0, %v738
        %v740 = vpop.f32.mrb[0].mxu0
        %v741 = vpop.f32.mrb[0].mxu0
        %v742 = vadd.f32 0.0, %v741
        %v743 = vpop.f32.mrb[0].mxu0
        %744 = vmatprep.mubr.bf16.mxu0 %v526
        %745 = vmatmul.mubr.bf16.gmra.mrb[0].mxu0 %v510
        %v746 = vpop.f32.mrb[0].mxu0
        %v747 = vadd.f32 0.0, %v746
        %v748 = vpop.f32.mrb[0].mxu0
        %v749 = vpop.f32.mrb[0].mxu0
        %v750 = vadd.f32 0.0, %v749
        %v751 = vpop.f32.mrb[0].mxu0
        %752 = vmatprep.mubr.bf16.mxu0 %v527
        %753 = vmatmul.mubr.bf16.gmra.mrb[0].mxu0 %v511
        %v754 = vpop.f32.mrb[0].mxu0
        %v755 = vadd.f32 0.0, %v754
        %v756 = vpop.f32.mrb[0].mxu0
        %v757 = vpop.f32.mrb[0].mxu0
        %v758 = vadd.f32 0.0, %v757
        %v759 = vpop.f32.mrb[0].mxu0
        %760 = vmatprep.mubr.bf16.mxu0 %v528
        %761 = vmatmul.mubr.bf16.gmra.mrb[0].mxu0 %v512
        %v762 = vpop.f32.mrb[0].mxu0
        %v763 = vadd.f32 0.0, %v762
        %v764 = vpop.f32.mrb[0].mxu0
        %v765 = vpop.f32.mrb[0].mxu0
        %v766 = vadd.f32 0.0, %v765
        %v767 = vpop.f32.mrb[0].mxu0
        %768 = vmatprep.mubr.bf16.mxu0 %v529
        %769 = vmatmul.mubr.bf16.gmra.mrb[0].mxu0 %v513
        %v770 = vpop.f32.mrb[0].mxu0
        %v771 = vadd.f32 0.0, %v770
        %v772 = vpop.f32.mrb[0].mxu0
        %v773 = vpop.f32.mrb[0].mxu0
        %v774 = vadd.f32 0.0, %v773
        %v775 = vpop.f32.mrb[0].mxu0
        %776 = vmatprep.mubr.bf16.mxu0 %v530
        %777 = vmatmul.mubr.bf16.gmra.mrb[0].mxu0 %v514
        %v778 = vpop.f32.mrb[0].mxu0
        %v779 = vadd.f32 0.0, %v778
        %v780 = vpop.f32.mrb[0].mxu0
        %v781 = vpop.f32.mrb[0].mxu0
        %v782 = vadd.f32 0.0, %v781
        %v783 = vpop.f32.mrb[0].mxu0
        %784 = vmatprep.mubr.bf16.mxu0 %v531
        %785 = vmatmul.mubr.bf16.gmra.mrb[0].mxu0 %v515
        %v786 = vpop.f32.mrb[0].mxu0
        %v787 = vadd.f32 0.0, %v786
        %v788 = vpop.f32.mrb[0].mxu0
        %v789 = vpop.f32.mrb[0].mxu0
        %v790 = vadd.f32 0.0, %v789
        %v791 = vpop.f32.mrb[0].mxu0
        %792 = vmatprep.mubr.bf16.mxu0 %v532
        %793 = vmatmul.mubr.bf16.gmra.mrb[0].mxu0 %v516
        %v794 = vpop.f32.mrb[0].mxu0
        %v795 = vadd.f32 0.0, %v794
        %v796 = vpop.f32.mrb[0].mxu0
        %v797 = vpop.f32.mrb[0].mxu0
        %v798 = vadd.f32 0.0, %v797
        %v799 = vpop.f32.mrb[0].mxu0
        %800 = vmatprep.mubr.bf16.mxu0 %v533
        %801 = vmatmul.mubr.bf16.gmra.mrb[0].mxu0 %v517
        %v802 = vpop.f32.mrb[0].mxu0
        %v803 = vadd.f32 0.0, %v802
        %v804 = vpop.f32.mrb[0].mxu0
        %v805 = vpop.f32.mrb[0].mxu0
        %v806 = vadd.f32 0.0, %v805
        %v807 = vpop.f32.mrb[0].mxu0
        %808 = vmatprep.mubr.bf16.mxu0 %v534
        %809 = vmatmul.mubr.bf16.gmra.mrb[0].mxu0 %v518
        %v810 = vpop.f32.mrb[0].mxu0
        %v811 = vadd.f32 0.0, %v810
        %v812 = vpop.f32.mrb[0].mxu0
        %v813 = vpop.f32.mrb[0].mxu0
        %v814 = vadd.f32 0.0, %v813
        %v815 = vpop.f32.mrb[0].mxu0
        %816 = vmatprep.mubr.bf16.mxu0 %v535
        %817 = vmatmul.mubr.bf16.gmra.mrb[0].mxu0 %v519
        %v818 = vpop.f32.mrb[0].mxu0
        %v819 = vadd.f32 0.0, %v818
        %v820 = vpop.f32.mrb[0].mxu0
        %v821 = vpop.f32.mrb[0].mxu0
        %v822 = vadd.f32 0.0, %v821
        %v823 = vpop.f32.mrb[0].mxu0
        %824 = vdwg.mxu0
        %v825 = vmax.f32 %v699, 0.0
        %v826 = vmax.f32 %v702, 0.0
        %v827 = vmax.f32 %v707, 0.0
        %v828 = vmax.f32 %v710, 0.0
        %v829 = vmax.f32 %v715, 0.0
        %v830 = vmax.f32 %v718, 0.0
        %v831 = vmax.f32 %v723, 0.0
        %v832 = vmax.f32 %v726, 0.0
        %v833 = vmax.f32 %v731, 0.0
        %v834 = vmax.f32 %v734, 0.0
        %v835 = vmax.f32 %v739, 0.0
        %v836 = vmax.f32 %v742, 0.0
        %v837 = vmax.f32 %v747, 0.0
        %v838 = vmax.f32 %v750, 0.0
        %v839 = vmax.f32 %v755, 0.0
        %v840 = vmax.f32 %v758, 0.0
        %v841 = vmax.f32 %v763, 0.0
        %v842 = vmax.f32 %v766, 0.0
        %v843 = vmax.f32 %v771, 0.0
        %v844 = vmax.f32 %v774, 0.0
        %v845 = vmax.f32 %v779, 0.0
        %v846 = vmax.f32 %v782, 0.0
        %v847 = vmax.f32 %v787, 0.0
        %v848 = vmax.f32 %v790, 0.0
        %v849 = vmax.f32 %v795, 0.0
        %v850 = vmax.f32 %v798, 0.0
        %v851 = vmax.f32 %v803, 0.0
        %v852 = vmax.f32 %v806, 0.0
        %v853 = vmax.f32 %v811, 0.0
        %v854 = vmax.f32 %v814, 0.0
        %v855 = vmax.f32 %v819, 0.0
        %v856 = vmax.f32 %v822, 0.0
        %s857 = sadd.s32 %s210, 256
        %p858 = scmp.le.s32.totalorder %s857, 256
        // Predicated region
        $region41: #{tpu_custom_call.1} parent=27 // pred_check
          %p859 = pneg %p858
        $region42: #{tpu_custom_call.1} parent=27 // pred_check_branch
          %861 = sbr.rel (%p859) target = $region44
        $region43: #{tpu_custom_call.1} parent=27 // pred_region
          %v862 = vld [vmem:[%s203] sm:$0xff]
          %v863 = vadd.f32 %v825, %v826
          %v864 = vadd.f32 %v863, %v827
          %v865 = vadd.f32 %v864, %v828
          %v866 = vadd.f32 %v865, %v829
          %v867 = vadd.f32 %v866, %v830
          %v868 = vadd.f32 %v867, %v831
          %v869 = vadd.f32 %v868, %v832
          %v870 = vadd.f32 %v869, %v833
          %v871 = vadd.f32 %v870, %v834
          %v872 = vadd.f32 %v871, %v835
          %v873 = vadd.f32 %v872, %v836
          %v874 = vadd.f32 %v873, %v837
          %v875 = vadd.f32 %v874, %v838
          %v876 = vadd.f32 %v875, %v839
          %v877 = vadd.f32 %v876, %v840
          %v878 = vadd.f32 %v877, %v841
          %v879 = vadd.f32 %v878, %v842
          %v880 = vadd.f32 %v879, %v843
          %v881 = vadd.f32 %v880, %v844
          %v882 = vadd.f32 %v881, %v845
          %v883 = vadd.f32 %v882, %v846
          %v884 = vadd.f32 %v883, %v847
          %v885 = vadd.f32 %v884, %v848
          %v886 = vadd.f32 %v885, %v849
          %v887 = vadd.f32 %v886, %v850
          %v888 = vadd.f32 %v887, %v851
          %v889 = vadd.f32 %v888, %v852
          %v890 = vadd.f32 %v889, %v853
          %v891 = vadd.f32 %v890, %v854
          %v892 = vadd.f32 %v891, %v855
          %v893 = vadd.f32 %v892, %v856
          %v894 = vadd.f32 %v862, %v893
          %895 = vst [vmem:[%s203] sm:$0xff] %v894
        $region44: #{tpu_custom_call.1} parent=27 // pred_fallthru
          _
        %p896 = scmp.gt.s32.totalorder %s857, 256
        // Predicated region
        $region45: #{tpu_custom_call.1} parent=27 // pred_check
          %p897 = pneg %p896
        $region46: #{tpu_custom_call.1} parent=27 // pred_check_branch
          %899 = sbr.rel (%p897) target = $region48
        $region47: #{tpu_custom_call.1} parent=27 // pred_region
          %v900 = vlaneseq
          %v901 = vshrl.u32 %v900, 7
          %v902 = vadd.s32 %v901, 8
          %v903 = vadd.s32 %v901, 16
          %v904 = vadd.s32 %v901, 24
          %v905 = vadd.s32 %v901, 32
          %v906 = vadd.s32 %v901, 40
          %v907 = vadd.s32 %v901, 48
          %v908 = vadd.s32 %v901, 56
          %v909 = vadd.s32 %v901, 64
          %v910 = vadd.s32 %v901, 72
          %v911 = vadd.s32 %v901, 80
          %v912 = vadd.s32 %v901, 88
          %v913 = vadd.s32 %v901, 96
          %v914 = vadd.s32 %v901, 104
          %v915 = vadd.s32 %v901, 112
          %v916 = vadd.s32 %v901, 120
          %v917 = vadd.s32 %v901, 128
          %v918 = vadd.s32 %v901, 136
          %v919 = vadd.s32 %v901, 144
          %v920 = vadd.s32 %v901, 152
          %v921 = vadd.s32 %v901, 160
          %v922 = vadd.s32 %v901, 168
          %v923 = vadd.s32 %v901, 176
          %v924 = vadd.s32 %v901, 184
          %v925 = vadd.s32 %v901, 192
          %v926 = vadd.s32 %v901, 200
          %v927 = vadd.s32 %v901, 208
          %v928 = vadd.s32 %v901, 216
          %v929 = vadd.s32 %v901, 224
          %v930 = vadd.s32 %v901, 232
          %v931 = vadd.s32 %v901, 240
          %v932 = vadd.s32 %v901, 248
          %v933 = vstv %s210
          %v934 = vadd.s32 %v933, %v901
          %v935 = vadd.s32 %v933, %v902
          %v936 = vadd.s32 %v933, %v903
          %v937 = vadd.s32 %v933, %v904
          %v938 = vadd.s32 %v933, %v905
          %v939 = vadd.s32 %v933, %v906
          %v940 = vadd.s32 %v933, %v907
          %v941 = vadd.s32 %v933, %v908
          %v942 = vadd.s32 %v933, %v909
          %v943 = vadd.s32 %v933, %v910
          %v944 = vadd.s32 %v933, %v911
          %v945 = vadd.s32 %v933, %v912
          %v946 = vadd.s32 %v933, %v913
          %v947 = vadd.s32 %v933, %v914
          %v948 = vadd.s32 %v933, %v915
          %v949 = vadd.s32 %v933, %v916
          %v950 = vadd.s32 %v933, %v917
          %v951 = vadd.s32 %v933, %v918
          %v952 = vadd.s32 %v933, %v919
          %v953 = vadd.s32 %v933, %v920
          %v954 = vadd.s32 %v933, %v921
          %v955 = vadd.s32 %v933, %v922
          %v956 = vadd.s32 %v933, %v923
          %v957 = vadd.s32 %v933, %v924
          %v958 = vadd.s32 %v933, %v925
          %v959 = vadd.s32 %v933, %v926
          %v960 = vadd.s32 %v933, %v927
          %v961 = vadd.s32 %v933, %v928
          %v962 = vadd.s32 %v933, %v929
          %v963 = vadd.s32 %v933, %v930
          %v964 = vadd.s32 %v933, %v931
          %v965 = vadd.s32 %v933, %v932
          %vm966 = vcmp.lt.s32.totalorder %v934, 256
          %vm967 = vcmp.lt.s32.totalorder %v935, 256
          %vm968 = vcmp.lt.s32.totalorder %v936, 256
          %vm969 = vcmp.lt.s32.totalorder %v937, 256
          %vm970 = vcmp.lt.s32.totalorder %v938, 256
          %vm971 = vcmp.lt.s32.totalorder %v939, 256
          %vm972 = vcmp.lt.s32.totalorder %v940, 256
          %vm973 = vcmp.lt.s32.totalorder %v941, 256
          %vm974 = vcmp.lt.s32.totalorder %v942, 256
          %vm975 = vcmp.lt.s32.totalorder %v943, 256
          %vm976 = vcmp.lt.s32.totalorder %v944, 256
          %vm977 = vcmp.lt.s32.totalorder %v945, 256
          %vm978 = vcmp.lt.s32.totalorder %v946, 256
          %vm979 = vcmp.lt.s32.totalorder %v947, 256
          %vm980 = vcmp.lt.s32.totalorder %v948, 256
          %vm981 = vcmp.lt.s32.totalorder %v949, 256
          %vm982 = vcmp.lt.s32.totalorder %v950, 256
          %vm983 = vcmp.lt.s32.totalorder %v951, 256
          %vm984 = vcmp.lt.s32.totalorder %v952, 256
          %vm985 = vcmp.lt.s32.totalorder %v953, 256
          %vm986 = vcmp.lt.s32.totalorder %v954, 256
          %vm987 = vcmp.lt.s32.totalorder %v955, 256
          %vm988 = vcmp.lt.s32.totalorder %v956, 256
          %vm989 = vcmp.lt.s32.totalorder %v957, 256
          %vm990 = vcmp.lt.s32.totalorder %v958, 256
          %vm991 = vcmp.lt.s32.totalorder %v959, 256
          %vm992 = vcmp.lt.s32.totalorder %v960, 256
          %vm993 = vcmp.lt.s32.totalorder %v961, 256
          %vm994 = vcmp.lt.s32.totalorder %v962, 256
          %vm995 = vcmp.lt.s32.totalorder %v963, 256
          %vm996 = vcmp.lt.s32.totalorder %v964, 256
          %vm997 = vcmp.lt.s32.totalorder %v965, 256
          %v998 = vsel %vm966, 1, 0
          %v999 = vsel %vm967, 1, 0
          %v1000 = vsel %vm968, 1, 0
          %v1001 = vsel %vm969, 1, 0
          %v1002 = vsel %vm970, 1, 0
          %v1003 = vsel %vm971, 1, 0
          %v1004 = vsel %vm972, 1, 0
          %v1005 = vsel %vm973, 1, 0
          %v1006 = vsel %vm974, 1, 0
          %v1007 = vsel %vm975, 1, 0
          %v1008 = vsel %vm976, 1, 0
          %v1009 = vsel %vm977, 1, 0
          %v1010 = vsel %vm978, 1, 0
          %v1011 = vsel %vm979, 1, 0
          %v1012 = vsel %vm980, 1, 0
          %v1013 = vsel %vm981, 1, 0
          %v1014 = vsel %vm982, 1, 0
          %v1015 = vsel %vm983, 1, 0
          %v1016 = vsel %vm984, 1, 0
          %v1017 = vsel %vm985, 1, 0
          %v1018 = vsel %vm986, 1, 0
          %v1019 = vsel %vm987, 1, 0
          %v1020 = vsel %vm988, 1, 0
          %v1021 = vsel %vm989, 1, 0
          %v1022 = vsel %vm990, 1, 0
          %v1023 = vsel %vm991, 1, 0
          %v1024 = vsel %vm992, 1, 0
          %v1025 = vsel %vm993, 1, 0
          %v1026 = vsel %vm994, 1, 0
          %v1027 = vsel %vm995, 1, 0
          %v1028 = vsel %vm996, 1, 0
          %v1029 = vsel %vm997, 1, 0
          %vm1030 = vcmp.eq.s32.totalorder %v998, 1
          %vm1031 = vcmp.eq.s32.totalorder %v999, 1
          %vm1032 = vcmp.eq.s32.totalorder %v1000, 1
          %vm1033 = vcmp.eq.s32.totalorder %v1001, 1
          %vm1034 = vcmp.eq.s32.totalorder %v1002, 1
          %vm1035 = vcmp.eq.s32.totalorder %v1003, 1
          %vm1036 = vcmp.eq.s32.totalorder %v1004, 1
          %vm1037 = vcmp.eq.s32.totalorder %v1005, 1
          %vm1038 = vcmp.eq.s32.totalorder %v1006, 1
          %vm1039 = vcmp.eq.s32.totalorder %v1007, 1
          %vm1040 = vcmp.eq.s32.totalorder %v1008, 1
          %vm1041 = vcmp.eq.s32.totalorder %v1009, 1
          %vm1042 = vcmp.eq.s32.totalorder %v1010, 1
          %vm1043 = vcmp.eq.s32.totalorder %v1011, 1
          %vm1044 = vcmp.eq.s32.totalorder %v1012, 1
          %vm1045 = vcmp.eq.s32.totalorder %v1013, 1
          %vm1046 = vcmp.eq.s32.totalorder %v1014, 1
          %vm1047 = vcmp.eq.s32.totalorder %v1015, 1
          %vm1048 = vcmp.eq.s32.totalorder %v1016, 1
          %vm1049 = vcmp.eq.s32.totalorder %v1017, 1
          %vm1050 = vcmp.eq.s32.totalorder %v1018, 1
          %vm1051 = vcmp.eq.s32.totalorder %v1019, 1
          %vm1052 = vcmp.eq.s32.totalorder %v1020, 1
          %vm1053 = vcmp.eq.s32.totalorder %v1021, 1
          %vm1054 = vcmp.eq.s32.totalorder %v1022, 1
          %vm1055 = vcmp.eq.s32.totalorder %v1023, 1
          %vm1056 = vcmp.eq.s32.totalorder %v1024, 1
          %vm1057 = vcmp.eq.s32.totalorder %v1025, 1
          %vm1058 = vcmp.eq.s32.totalorder %v1026, 1
          %vm1059 = vcmp.eq.s32.totalorder %v1027, 1
          %vm1060 = vcmp.eq.s32.totalorder %v1028, 1
          %vm1061 = vcmp.eq.s32.totalorder %v1029, 1
          %v1062 = vsel %vm1030, %v825, 0.0
          %v1063 = vsel %vm1031, %v826, 0.0
          %v1064 = vsel %vm1032, %v827, 0.0
          %v1065 = vsel %vm1033, %v828, 0.0
          %v1066 = vsel %vm1034, %v829, 0.0
          %v1067 = vsel %vm1035, %v830, 0.0
          %v1068 = vsel %vm1036, %v831, 0.0
          %v1069 = vsel %vm1037, %v832, 0.0
          %v1070 = vsel %vm1038, %v833, 0.0
          %v1071 = vsel %vm1039, %v834, 0.0
          %v1072 = vsel %vm1040, %v835, 0.0
          %v1073 = vsel %vm1041, %v836, 0.0
          %v1074 = vsel %vm1042, %v837, 0.0
          %v1075 = vsel %vm1043, %v838, 0.0
          %v1076 = vsel %vm1044, %v839, 0.0
          %v1077 = vsel %vm1045, %v840, 0.0
          %v1078 = vsel %vm1046, %v841, 0.0
          %v1079 = vsel %vm1047, %v842, 0.0
          %v1080 = vsel %vm1048, %v843, 0.0
          %v1081 = vsel %vm1049, %v844, 0.0
          %v1082 = vsel %vm1050, %v845, 0.0
          %v1083 = vsel %vm1051, %v846, 0.0
          %v1084 = vsel %vm1052, %v847, 0.0
          %v1085 = vsel %vm1053, %v848, 0.0
          %v1086 = vsel %vm1054, %v849, 0.0
          %v1087 = vsel %vm1055, %v850, 0.0
          %v1088 = vsel %vm1056, %v851, 0.0
          %v1089 = vsel %vm1057, %v852, 0.0
          %v1090 = vsel %vm1058, %v853, 0.0
          %v1091 = vsel %vm1059, %v854, 0.0
          %v1092 = vsel %vm1060, %v855, 0.0
          %v1093 = vsel %vm1061, %v856, 0.0
          %v1094 = vld [vmem:[%s203] sm:$0xff]
          %v1095 = vadd.f32 %v1062, %v1063
          %v1096 = vadd.f32 %v1095, %v1064
          %v1097 = vadd.f32 %v1096, %v1065
          %v1098 = vadd.f32 %v1097, %v1066
          %v1099 = vadd.f32 %v1098, %v1067
          %v1100 = vadd.f32 %v1099, %v1068
          %v1101 = vadd.f32 %v1100, %v1069
          %v1102 = vadd.f32 %v1101, %v1070
          %v1103 = vadd.f32 %v1102, %v1071
          %v1104 = vadd.f32 %v1103, %v1072
          %v1105 = vadd.f32 %v1104, %v1073
          %v1106 = vadd.f32 %v1105, %v1074
          %v1107 = vadd.f32 %v1106, %v1075
          %v1108 = vadd.f32 %v1107, %v1076
          %v1109 = vadd.f32 %v1108, %v1077
          %v1110 = vadd.f32 %v1109, %v1078
          %v1111 = vadd.f32 %v1110, %v1079
          %v1112 = vadd.f32 %v1111, %v1080
          %v1113 = vadd.f32 %v1112, %v1081
          %v1114 = vadd.f32 %v1113, %v1082
          %v1115 = vadd.f32 %v1114, %v1083
          %v1116 = vadd.f32 %v1115, %v1084
          %v1117 = vadd.f32 %v1116, %v1085
          %v1118 = vadd.f32 %v1117, %v1086
          %v1119 = vadd.f32 %v1118, %v1087
          %v1120 = vadd.f32 %v1119, %v1088
          %v1121 = vadd.f32 %v1120, %v1089
          %v1122 = vadd.f32 %v1121, %v1090
          %v1123 = vadd.f32 %v1122, %v1091
          %v1124 = vadd.f32 %v1123, %v1092
          %v1125 = vadd.f32 %v1124, %v1093
          %v1126 = vadd.f32 %v1094, %v1125
          %1127 = vst [vmem:[%s203] sm:$0xff] %v1126
        $region48: #{tpu_custom_call.1} parent=27 // pred_fallthru
          _
        %s1128 = sand.u32 %s100, 1
        %s1129 = scalar_lea.sflag [#allocation4], %s1128
        %s1130 = sand.u32 %s100, 1
        %s1131 = smul.addr %s1130, 8
        %s1132 = scalar_lea.vmem [#allocation7], %s1131
        // Predicated region
        $region49: #{tpu_custom_call.1} parent=27 // pred_check
          %p1133 = pneg %p110
        $region50: #{tpu_custom_call.1} parent=27 // pred_check_branch
          %1135 = sbr.rel (%p1133) target = $region52
        $region51: #{tpu_custom_call.1} parent=27 // pred_region
          %s1136 = sadd.s32 %s25, %s26
          %s1138 = ssub.s32 128, 128
          %1139 = vsyncadd %s1129, %s1138
          %s1140 = smul.addr %s1136, 128
          %s1141 = scalar_lea.hbm %s2, %s1140
          %s1143 = sshll.u32 %s1132, 4
          %s1144 = int_to_ptr.vmem [resolvable:$true] %s1143
          %1146 = dma.vmem_to_hbm [thread:$0]  %s1144, 128, %s1141, %s1129
        $region52: #{tpu_custom_call.1} parent=27 // pred_fallthru
          _
      $region28: #{tpu_custom_call.1} parent=5 // pred_fallthru
        _
      %p1147 = scmp.le.s32.totalorder 2, %s15
      // Predicated region
      $region53: #{tpu_custom_call.1} parent=5 // pred_check
        %p1148 = pneg %p1147
      $region54: #{tpu_custom_call.1} parent=5 // pred_check_branch
        %1150 = sbr.rel (%p1148) target = $region56
      $region55: #{tpu_custom_call.1} parent=5 // pred_region
        %s1151 = ssub.s32 %s15, 2
        // Predicated region
        $region57: #{tpu_custom_call.1} parent=55 // pred_check
          %p1152 = pneg %p116
        $region58: #{tpu_custom_call.1} parent=55 // pred_check_branch
          %1154 = sbr.rel (%p1152) target = $region60
        $region59: #{tpu_custom_call.1} parent=55 // pred_region
          %s1155 = sand.u32 %s101, 1
          %s1156 = scalar_lea.sflag [#allocation4], %s1155
          %s1157 = sand.u32 %s101, 1
          %s1158 = smul.addr %s1157, 8
          %s1159 = scalar_lea.vmem [#allocation7], %s1158
          %1160 = dma.done %s1156, 128
        $region60: #{tpu_custom_call.1} parent=55 // pred_fallthru
          _
      $region56: #{tpu_custom_call.1} parent=5 // pred_fallthru
        _
    $region6: #{tpu_custom_call.1} parent=1 // loop_footer
      %s19 = sadd.s32 1, %s15
    $region7: #{tpu_custom_call.1} parent=1 // loop_footer_branch
      %14 = sbr.rel target = $region3
    $region8: #{tpu_custom_call.1} parent=1 // loop_exit
      _
    %1161 = vsyncpa [#allocation3], 1
    %s1162 = scalar_lea.sflag [#allocation3], 1
    %1163 = vsyncpa %s1162, 1
    %1164 = vsyncpa [#allocation6], 1
    %1165 = vsyncpa [#allocation4], 1
    %s1166 = scalar_lea.sflag [#allocation4], 1
    %1167 = vsyncpa %s1166, 1

</llo_original>
